<compile_context>
chip_gen: v6e
topology: v6e:2x2x1
jax: 0.10.0
libtpu: 0.0.40
codegen_flags: <defaults>
</compile_context>

<pallas_src>
import jax
import jax.numpy as jnp
from jax.experimental import pallas as pl
from jax.experimental.pallas import tpu as pltpu


def _round_up(x: int, m: int) -> int:
    return ((x + m - 1) // m) * m


def _row_align(dtype) -> int:
    """Minimum sublane multiple for the second-minor dim of a tile of `dtype`."""
    itemsize = jnp.dtype(dtype).itemsize
    if itemsize == 2:
        return 16
    if itemsize == 1:
        return 32
    return 8


def _pick_tile(dim: int, preset: int, align: int) -> int:
    """Largest tile <= preset (multiple of `align`) minimizing padding of `dim`."""
    full = _round_up(dim, align)
    if full <= preset:
        return full  # single tile, minimal padding
    cands = []
    c = preset
    while c >= align:
        cands.append(c)
        c //= 2
    if align not in cands:
        cands.append(align)
    # minimal padded extent; tie-break toward the largest tile
    return min(cands, key=lambda t: (_round_up(dim, t), -t))


def _device_preset():
    kind = ""
    try:
        kind = jax.devices()[0].device_kind.lower()
    except Exception:
        pass
    if ("v5" in kind) or ("v6" in kind):
        # 128 MiB physical VMEM, 1 TensorCore per chip: large tiles, generous budget.
        return dict(tm=512, tk=2048, tn=1024,
                    vmem_limit=100 * 1024 * 1024, two_cores=False)
    # v7x (64 MiB VMEM, 2 TensorCores per chip) or unknown: conservative preset.
    return dict(tm=512, tk=1024, tn=1024,
                vmem_limit=56 * 1024 * 1024, two_cores=True)


def _matmul_kernel_acc(x_ref, w_ref, o_ref, acc_ref):
    """Narrow output dtype: accumulate in an f32 VMEM scratch, cast on last k."""
    k = pl.program_id(2)

    @pl.when(k == 0)
    def _():
        acc_ref[...] = jnp.zeros_like(acc_ref)

    acc_ref[...] += jnp.dot(x_ref[...], w_ref[...],
                            preferred_element_type=jnp.float32)

    @pl.when(k == pl.num_programs(2) - 1)
    def _():
        o_ref[...] = acc_ref[...].astype(o_ref.dtype)


def _matmul_kernel_f32out(x_ref, w_ref, o_ref):
    """f32 output: accumulate directly into the resident output block (no scratch)."""
    k = pl.program_id(2)

    @pl.when(k == 0)
    def _():
        o_ref[...] = jnp.zeros_like(o_ref)

    o_ref[...] += jnp.dot(x_ref[...], w_ref[...],
                          preferred_element_type=jnp.float32)


def tied_transpose(
    x: jax.Array,
    weight: jax.Array,
    *,
    compute_dtype=jnp.bfloat16,
    tm: int | None = None,
    tk: int | None = None,
    tn: int | None = None,
    vmem_limit_bytes: int | None = None,
) -> jax.Array:
    """y = x @ weight, where weight is the nn.Linear weight (out_features, in_features).

    x: (batch, out_features), weight: (out_features, in_features) -> y: (batch, in_features)
    """
    M, K = x.shape
    K2, N = weight.shape
    assert K == K2, f"x last dim {K} must equal weight.shape[0] {K2}"

    out_dtype = x.dtype

    # bf16 MXU compute by default (f32 accumulation). Skip the cast when the
    # caller already supplies compute-dtype arrays (cast W once outside a sweep).
    if compute_dtype is not None:
        if x.dtype != compute_dtype:
            x = x.astype(compute_dtype)
        if weight.dtype != compute_dtype:
            weight = weight.astype(compute_dtype)

    in_bytes = max(jnp.dtype(x.dtype).itemsize, jnp.dtype(weight.dtype).itemsize)
    out_bytes = jnp.dtype(out_dtype).itemsize
    row_align = max(_row_align(x.dtype), _row_align(out_dtype))

    preset = _device_preset()
    tm_p = tm if tm is not None else preset["tm"]
    tk_p = tk if tk is not None else preset["tk"]
    tn_p = tn if tn is not None else preset["tn"]
    vmem_limit = int(vmem_limit_bytes if vmem_limit_bytes is not None
                     else preset["vmem_limit"])

    tm_e = _pick_tile(M, tm_p, row_align)
    tk_e = _pick_tile(K, tk_p, 128)
    n_pad = _round_up(N, 128)
    if tn is None and n_pad <= max(tn_p, 2048):
        # Full-width output tile: x is streamed from HBM exactly once, output
        # stores are unmasked / lane-dense, and there is no N-tiling waste.
        tn_e = n_pad
    else:
        tn_e = _pick_tile(N, tn_p, 128)

    use_scratch = out_dtype != jnp.float32

    def footprint(tm_, tk_, tn_):
        b = 2 * (tm_ * tk_ + tk_ * tn_) * in_bytes   # double-buffered inputs
        b += 2 * tm_ * tn_ * out_bytes               # double-buffered output
        if use_scratch:
            b += tm_ * tn_ * 4                       # f32 accumulator scratch
        return b

    budget = int(vmem_limit * 0.9)
    while footprint(tm_e, tk_e, tn_e) > budget:
        if tk_e >= 512:
            tk_e //= 2
        elif tn_e >= 512:
            tn_e = _round_up(tn_e // 2, 128)
        elif tm_e > row_align:
            tm_e = max(row_align, _round_up(tm_e // 2, row_align))
        else:
            break

    Mp = _round_up(M, tm_e)
    Kp = _round_up(K, tk_e)
    Np = _round_up(N, tn_e)

    # v7x has 2 TensorCores: make sure at least one "parallel" grid axis has
    # >= 2 tiles so both cores get work (split N -- W is not re-read across j,
    # and x is tiny when M fits a single tile).
    if (tn is None and preset["two_cores"]
            and Mp // tm_e == 1 and Np // tn_e == 1 and tn_e >= 256):
        tn_e = _round_up(tn_e // 2, 128)
        Np = _round_up(N, tn_e)

    if (Mp, Kp) != (M, K):
        x = jnp.pad(x, ((0, Mp - M), (0, Kp - K)))
    if (Kp, Np) != (K, N):
        weight = jnp.pad(weight, ((0, Kp - K), (0, Np - N)))

    grid = (Mp // tm_e, Np // tn_e, Kp // tk_e)
    n_m, n_n, _ = grid

    cost = pl.CostEstimate(
        flops=int(2 * Mp * Kp * Np),
        transcendentals=0,
        bytes_accessed=int(
            Mp * Kp * in_bytes * n_n      # x re-streamed once per N tile
            + Kp * Np * in_bytes * n_m    # W re-streamed once per M tile
            + Mp * Np * out_bytes
        ),
    )

    if use_scratch:
        kernel = _matmul_kernel_acc
        scratch_shapes = [pltpu.VMEM((tm_e, tn_e), jnp.float32)]
    else:
        kernel = _matmul_kernel_f32out
        scratch_shapes = []

    y_padded = pl.pallas_call(
        kernel,
        out_shape=jax.ShapeDtypeStruct((Mp, Np), out_dtype),
        grid_spec=pltpu.PrefetchScalarGridSpec(
            num_scalar_prefetch=0,
            grid=grid,
            in_specs=[
                # activation tile: (tm, tk), walks the K axis with k
                pl.BlockSpec((tm_e, tk_e), lambda i, j, k: (i, k)),
                # weight tile: (tk, tn), streamed HBM->VMEM per (j, k)
                pl.BlockSpec((tk_e, tn_e), lambda i, j, k: (k, j)),
            ],
            # same output block across k -> resident accumulator target
            out_specs=pl.BlockSpec((tm_e, tn_e), lambda i, j, k: (i, j)),
            scratch_shapes=scratch_shapes,
        ),
        compiler_params=pltpu.CompilerParams(
            dimension_semantics=("parallel", "parallel", "arbitrary"),
            vmem_limit_bytes=vmem_limit,
        ),
        cost_estimate=cost,
    )(x, weight)

    if (Mp, Np) != (M, N):
        y_padded = y_padded[:M, :N]
    return y_padded


if __name__ == "__main__":
    # Deterministic synthetic parameters / inputs (no checkpoint loading).
    key = jax.random.PRNGKey(0)
    kx, kw, kx2, kw2, kx3, kw3 = jax.random.split(key, 6)

    # --- Small shape matching the toy module sizes, exact f32 parity path ---
    in_features = 32     # d_model-like
    out_features = 64    # n_latents-like
    batch = 16

    # nn.Linear(in_features, out_features, bias=False).weight -> (out_features, in_features)
    weight = jax.random.normal(kw, (out_features, in_features), dtype=jnp.float32) * 0.02
    # x has out_features on its last dim (decoder / tied-transpose direction)
    x = jax.random.normal(kx, (batch, out_features), dtype=jnp.float32)

    y = jax.block_until_ready(tied_transpose(x, weight, compute_dtype=None))
    y_ref = x @ weight
    assert y.shape == (batch, in_features)
    assert jnp.allclose(y, y_ref, atol=1e-4, rtol=1e-4), "mismatch vs reference (f32 parity)"

    # --- bf16 default path; explicit small tiles exercise M/N/K tiling,
    #     padding, and the K-axis accumulation loop ---
    M2, K2, N2 = 384, 1024, 256
    w2 = jax.random.normal(kw2, (K2, N2), dtype=jnp.float32) * 0.02
    x2 = jax.random.normal(kx2, (M2, K2), dtype=jnp.float32)

    y2 = jax.block_until_ready(tied_transpose(x2, w2, tm=128, tk=256, tn=128))
    y2_ref = x2 @ w2
    assert y2.shape == (M2, N2)
    assert jnp.allclose(y2, y2_ref, atol=5e-2, rtol=5e-2), "mismatch vs reference (bf16 tiled)"

    # --- bf16 inputs (narrow output dtype -> f32 scratch-accumulator kernel) ---
    M3, K3, N3 = 32, 256, 128
    w3 = (jax.random.normal(kw3, (K3, N3), dtype=jnp.float32) * 0.02).astype(jnp.bfloat16)
    x3 = jax.random.normal(kx3, (M3, K3), dtype=jnp.float32).astype(jnp.bfloat16)

    y3 = jax.block_until_ready(tied_transpose(x3, w3))
    y3_ref = (x3.astype(jnp.float32) @ w3.astype(jnp.float32)).astype(jnp.bfloat16)
    assert y3.shape == (M3, N3)
    assert jnp.allclose(y3.astype(jnp.float32), y3_ref.astype(jnp.float32),
                        atol=5e-2, rtol=5e-2), "mismatch vs reference (bf16 out)"

    print("KERNEL_OK")
</pallas_src>

<mosaic_0001>
module attributes {stable_mosaic.version = 11 : i64} {
  func.func @_matmul_kernel_f32out(%arg0: i32, %arg1: i32, %arg2: i32, %arg3: memref<16x128xf32, #tpu.memory_space<vmem>>, %arg4: memref<128x128xf32, #tpu.memory_space<vmem>>, %arg5: memref<16x128xf32, #tpu.memory_space<vmem>>) attributes {dimension_semantics = [#tpu.dimension_semantics<parallel>, #tpu.dimension_semantics<parallel>, #tpu.dimension_semantics<arbitrary>], iteration_bounds = array<i64: 1, 1, 1>, scalar_prefetch = 0 : i64, scratch_operands = 0 : i64, tpu.core_type = #tpu.core_type<tc>, window_params = [{transform_indices = @transform_0, window_bounds = array<i64: 16, 128>}, {transform_indices = @transform_1, window_bounds = array<i64: 128, 128>}, {transform_indices = @transform_2, window_bounds = array<i64: 16, 128>}]} {
    %c0_i32 = arith.constant 0 : i32
    %0 = arith.cmpi eq, %arg2, %c0_i32 : i32
    %1 = arith.extui %0 : i1 to i32
    %c0_i32_0 = arith.constant 0 : i32
    %2 = arith.cmpi ne, %1, %c0_i32_0 : i32
    scf.if %2 {
      %cst_8 = arith.constant 0.000000e+00 : f32
      %9 = vector.broadcast %cst_8 : f32 to vector<16x128xf32>
      %c0_9 = arith.constant 0 : index
      %c0_10 = arith.constant 0 : index
      %10 = vector.load %arg5[%c0_9, %c0_10] : memref<16x128xf32, #tpu.memory_space<vmem>>, vector<16x128xf32>
      tpu.vector_store %arg5[%c0_9, %c0_10], %9 {strides = array<i32>} : memref<16x128xf32, #tpu.memory_space<vmem>>, vector<16x128xf32>,
    } else {
    }
    %c0 = arith.constant 0 : index
    %c0_1 = arith.constant 0 : index
    %3 = vector.load %arg5[%c0, %c0_1] : memref<16x128xf32, #tpu.memory_space<vmem>>, vector<16x128xf32>
    %c0_2 = arith.constant 0 : index
    %c0_3 = arith.constant 0 : index
    %4 = vector.load %arg3[%c0_2, %c0_3] : memref<16x128xf32, #tpu.memory_space<vmem>>, vector<16x128xf32>
    %c0_4 = arith.constant 0 : index
    %c0_5 = arith.constant 0 : index
    %5 = vector.load %arg4[%c0_4, %c0_5] : memref<128x128xf32, #tpu.memory_space<vmem>>, vector<128x128xf32>
    %cst = arith.constant dense<0.000000e+00> : vector<16x128xf32>
    %6 = tpu.matmul %4, %5, %cst {dimension_numbers = #tpu.dot_dimension_numbers<[1], [0], [0], [1], [0, 0, 1, 1], [], []>} : vector<16x128xf32>, vector<128x128xf32>, vector<16x128xf32> -> vector<16x128xf32>
    %7 = arith.addf %3, %6 : vector<16x128xf32>
    %c0_6 = arith.constant 0 : index
    %c0_7 = arith.constant 0 : index
    %8 = vector.load %arg5[%c0_6, %c0_7] : memref<16x128xf32, #tpu.memory_space<vmem>>, vector<16x128xf32>
    tpu.vector_store %arg5[%c0_6, %c0_7], %7 {strides = array<i32>} : memref<16x128xf32, #tpu.memory_space<vmem>>, vector<16x128xf32>,
    return
  }
  func.func @transform_0(%arg0: i32, %arg1: i32, %arg2: i32) -> (i32, i32) {
    %c0_i32 = arith.constant 0 : i32
    return %arg0, %arg2 : i32, i32
  }
  func.func @transform_1(%arg0: i32, %arg1: i32, %arg2: i32) -> (i32, i32) {
    %c0_i32 = arith.constant 0 : i32
    return %arg2, %arg1 : i32, i32
  }
  func.func @transform_2(%arg0: i32, %arg1: i32, %arg2: i32) -> (i32, i32) {
    %c0_i32 = arith.constant 0 : i32
    return %arg0, %arg1 : i32, i32
  }
}

</mosaic_0001>

<llo_original>
// kernel: tpu_custom_call.1
$region0: #{tpu_custom_call.1}
  #allocation0 [shape = 'u32[]', space=smem, size = 0x4, offset = 0x4, fixed_abs, tag = 'smem constant byte address 0x4 - core index']
  #allocation1 [shape = 'u32[144,128]{1,0:T(1,128)}', space=vmem, size = 0x12000, scoped, tag = 'internal scratch']
  %s0 = inlined_call_operand.hbm [shape: f32[16,128], index: 0, kind: input, shape index: {}]
  %s1 = inlined_call_operand.hbm [shape: f32[128,128], index: 1, kind: input, shape index: {}]
  %s2 = inlined_call_operand.hbm [shape: f32[16,128], index: 2, kind: output, shape index: {}]
  %s3 = sld [smem:[#allocation0]]
  $region30: #{tpu_custom_call.1} parent=0
    _
  %s5 = ssub.s32 1, %s3
  %s6 = scalar_select 0, %s5, %s3
  $region1: #{tpu_custom_call.1} parent=0
    #allocation2 [shape = 'u8[8192]{0}', space=vmem, size = 0x2000, scoped, tag = 'input window, operand 0, single buffered']
    #allocation3 [shape = 's32[1]{0}', space=sflag, size = 0x4, scoped, tag = 'scoped memory for tpu_custom_call.1']
    #allocation4 [shape = 's32[1]{0}', space=sflag, size = 0x4, scoped, tag = 'scoped memory for tpu_custom_call.1']
    #allocation5 [shape = 'u8[65536]{0}', space=vmem, size = 0x10000, scoped, tag = 'input window, operand 1, single buffered']
    #allocation6 [shape = 's32[1]{0}', space=sflag, size = 0x4, scoped, tag = 'scoped memory for tpu_custom_call.1']
    #allocation7 [shape = 'u8[8192]{0}', space=vmem, size = 0x2000, scoped, tag = 'output window, operand 0, single buffered']
    %7 = vsyncpa [#allocation3], 0
    %8 = vsyncpa [#allocation6], 0
    %9 = vsyncpa [#allocation4], 0
    // Predicated region
    $region2: #{tpu_custom_call.1} parent=1 // pred_check
      _
    $region3: #{tpu_custom_call.1} parent=1 // pred_check_branch
      %11 = sbr.rel (0) target = $region5
    $region4: #{tpu_custom_call.1} parent=1 // pred_region
      %s13 = ssub.s32 256, 256
      %14 = vsyncadd [#allocation3], %s13
      %s15 = sshll.u32 [#allocation2], 4
      %s16 = int_to_ptr.vmem [resolvable:$true] %s15
      %21 = dma.hbm_to_vmem [thread:$0]  %s0, 256, %s16, [#allocation3], 128, 128, 8
    $region5: #{tpu_custom_call.1} parent=1 // pred_fallthru
      _
    // Predicated region
    $region6: #{tpu_custom_call.1} parent=1 // pred_check
      _
    $region7: #{tpu_custom_call.1} parent=1 // pred_check_branch
      %23 = sbr.rel (0) target = $region9
    $region8: #{tpu_custom_call.1} parent=1 // pred_region
      %s25 = ssub.s32 2048, 2048
      %26 = vsyncadd [#allocation6], %s25
      %s27 = sshll.u32 [#allocation5], 4
      %s28 = int_to_ptr.vmem [resolvable:$true] %s27
      %33 = dma.hbm_to_vmem [thread:$0]  %s1, 2048, %s28, [#allocation6], 128, 128, 8
    $region9: #{tpu_custom_call.1} parent=1 // pred_fallthru
      _
    // Predicated region
    $region10: #{tpu_custom_call.1} parent=1 // pred_check
      _
    $region11: #{tpu_custom_call.1} parent=1 // pred_check_branch
      %35 = sbr.rel (0) target = $region13
    $region12: #{tpu_custom_call.1} parent=1 // pred_region
      %36 = dma.done [#allocation3], 256
    $region13: #{tpu_custom_call.1} parent=1 // pred_fallthru
      _
    // Predicated region
    $region14: #{tpu_custom_call.1} parent=1 // pred_check
      _
    $region15: #{tpu_custom_call.1} parent=1 // pred_check_branch
      %38 = sbr.rel (0) target = $region17
    $region16: #{tpu_custom_call.1} parent=1 // pred_region
      %39 = dma.done [#allocation6], 2048
    $region17: #{tpu_custom_call.1} parent=1 // pred_fallthru
      _
    %p40 = scmp.eq.s32.totalorder 0, 0
    // Predicated region
    $region18: #{tpu_custom_call.1} parent=1 // pred_check
      %p41 = pneg %p40
    $region19: #{tpu_custom_call.1} parent=1 // pred_check_branch
      %43 = sbr.rel (%p41) target = $region21
    $region20: #{tpu_custom_call.1} parent=1 // pred_region
      %44 = vst [vmem:[#allocation7] sm:$0xff] 0.0
      %45 = vst [vmem:[#allocation7 + $0x8] sm:$0xff] 0.0
    $region21: #{tpu_custom_call.1} parent=1 // pred_fallthru
      _
    %v46 = vld [vmem:[#allocation7] sm:$0xff]
    %v47 = vld [vmem:[#allocation7 + $0x8] sm:$0xff]
    %v48 = vld [vmem:[#allocation2] sm:$0xff]
    %v49 = vld [vmem:[#allocation2 + $0x8] sm:$0xff]
    %v50 = vld [vmem:[#allocation5] sm:$0xff]
    %v51 = vld [vmem:[#allocation5 + $0x8] sm:$0xff]
    %v52 = vld [vmem:[#allocation5 + $0x10] sm:$0xff]
    %v53 = vld [vmem:[#allocation5 + $0x18] sm:$0xff]
    %v54 = vld [vmem:[#allocation5 + $0x20] sm:$0xff]
    %v55 = vld [vmem:[#allocation5 + $0x28] sm:$0xff]
    %v56 = vld [vmem:[#allocation5 + $0x30] sm:$0xff]
    %v57 = vld [vmem:[#allocation5 + $0x38] sm:$0xff]
    %v58 = vld [vmem:[#allocation5 + $0x40] sm:$0xff]
    %v59 = vld [vmem:[#allocation5 + $0x48] sm:$0xff]
    %v60 = vld [vmem:[#allocation5 + $0x50] sm:$0xff]
    %v61 = vld [vmem:[#allocation5 + $0x58] sm:$0xff]
    %v62 = vld [vmem:[#allocation5 + $0x60] sm:$0xff]
    %v63 = vld [vmem:[#allocation5 + $0x68] sm:$0xff]
    %v64 = vld [vmem:[#allocation5 + $0x70] sm:$0xff]
    %v65 = vld [vmem:[#allocation5 + $0x78] sm:$0xff]
    %66 = vmatprep.subr.mxu0 0.0
    %67 = vmatpush1.msra.mxu0 %v65
    %68 = vmatprep.subr.mxu0 0.0
    %69 = vmatpush1.msra.mxu0 %v64
    %70 = vmatprep.subr.mxu0 0.0
    %71 = vmatpush1.msra.mxu0 %v63
    %72 = vmatprep.subr.mxu0 0.0
    %73 = vmatpush1.msra.mxu0 %v62
    %74 = vmatprep.subr.mxu0 0.0
    %75 = vmatpush1.msra.mxu0 %v61
    %76 = vmatprep.subr.mxu0 0.0
    %77 = vmatpush1.msra.mxu0 %v60
    %78 = vmatprep.subr.mxu0 0.0
    %79 = vmatpush1.msra.mxu0 %v59
    %80 = vmatprep.subr.mxu0 0.0
    %81 = vmatpush1.msra.mxu0 %v58
    %82 = vmatprep.subr.mxu0 0.0
    %83 = vmatpush1.msra.mxu0 %v57
    %84 = vmatprep.subr.mxu0 0.0
    %85 = vmatpush1.msra.mxu0 %v56
    %86 = vmatprep.subr.mxu0 0.0
    %87 = vmatpush1.msra.mxu0 %v55
    %88 = vmatprep.subr.mxu0 0.0
    %89 = vmatpush1.msra.mxu0 %v54
    %90 = vmatprep.subr.mxu0 0.0
    %91 = vmatpush1.msra.mxu0 %v53
    %92 = vmatprep.subr.mxu0 0.0
    %93 = vmatpush1.msra.mxu0 %v52
    %94 = vmatprep.subr.mxu0 0.0
    %95 = vmatpush1.msra.mxu0 %v51
    %96 = vmatprep.subr.mxu0 0.0
    %97 = vmatpush1.msra.mxu0 %v50
    %98 = vmatprep.subr.mxu0 0.0
    %99 = vmatpush2.msra.mxu0 0.0
    %100 = vmatprep.subr.mxu0 0.0
    %101 = vmatpush2.msra.mxu0 0.0
    %102 = vmatprep.subr.mxu0 0.0
    %103 = vmatpush2.msra.mxu0 0.0
    %104 = vmatprep.subr.mxu0 0.0
    %105 = vmatpush2.msra.mxu0 0.0
    %106 = vmatprep.subr.mxu0 0.0
    %107 = vmatpush2.msra.mxu0 0.0
    %108 = vmatprep.subr.mxu0 0.0
    %109 = vmatpush2.msra.mxu0 0.0
    %110 = vmatprep.subr.mxu0 0.0
    %111 = vmatpush2.msra.mxu0 0.0
    %112 = vmatprep.subr.mxu0 0.0
    %113 = vmatpush2.msra.mxu0 0.0
    %114 = vmatprep.subr.mxu0 0.0
    %115 = vmatpush2.msra.mxu0 0.0
    %116 = vmatprep.subr.mxu0 0.0
    %117 = vmatpush2.msra.mxu0 0.0
    %118 = vmatprep.subr.mxu0 0.0
    %119 = vmatpush2.msra.mxu0 0.0
    %120 = vmatprep.subr.mxu0 0.0
    %121 = vmatpush2.msra.mxu0 0.0
    %122 = vmatprep.subr.mxu0 0.0
    %123 = vmatpush2.msra.mxu0 0.0
    %124 = vmatprep.subr.mxu0 0.0
    %125 = vmatpush2.msra.mxu0 0.0
    %126 = vmatprep.subr.mxu0 0.0
    %127 = vmatpush2.msra.mxu0 0.0
    %128 = vmatprep.subr.mxu0 0.0
    %129 = vmatpush2.msra.mxu0 0.0
    %130 = vmatprep.mubr.f32.mxu0 0.0
    %131 = vmatmul.mubr.f32.gmra.mxu0 %v48
    %v132 = vpop.f32.mrf.mxu0
    %v133 = vadd.f32 0.0, %v132
    %v134 = vpop.f32.mrf.mxu0
    %135 = vmatprep.mubr.f32.mxu0 0.0
    %136 = vmatmul.mubr.f32.gmra.mxu0 %v49
    %v137 = vpop.f32.mrf.mxu0
    %v138 = vadd.f32 0.0, %v137
    %v139 = vpop.f32.mrf.mxu0
    %140 = vdwg.mxu0
    %v141 = vadd.f32 %v46, %v133
    %v142 = vadd.f32 %v47, %v138
    %143 = vst [vmem:[#allocation7] sm:$0xff] %v141
    %144 = vst [vmem:[#allocation7 + $0x8] sm:$0xff] %v142
    // Predicated region
    $region22: #{tpu_custom_call.1} parent=1 // pred_check
      _
    $region23: #{tpu_custom_call.1} parent=1 // pred_check_branch
      %146 = sbr.rel (0) target = $region25
    $region24: #{tpu_custom_call.1} parent=1 // pred_region
      %s148 = ssub.s32 256, 256
      %149 = vsyncadd [#allocation4], %s148
      %s150 = sshll.u32 [#allocation7], 4
      %s151 = int_to_ptr.vmem [resolvable:$true] %s150
      %156 = dma.vmem_to_hbm [thread:$0]  %s151, 256, %s2, [#allocation4], 128, 128, 8
    $region25: #{tpu_custom_call.1} parent=1 // pred_fallthru
      _
    // Predicated region
    $region26: #{tpu_custom_call.1} parent=1 // pred_check
      _
    $region27: #{tpu_custom_call.1} parent=1 // pred_check_branch
      %158 = sbr.rel (0) target = $region29
    $region28: #{tpu_custom_call.1} parent=1 // pred_region
      %159 = dma.done [#allocation4], 256
    $region29: #{tpu_custom_call.1} parent=1 // pred_fallthru
      _
    %160 = vsyncpa [#allocation3], 1
    %161 = vsyncpa [#allocation6], 1
    %162 = vsyncpa [#allocation4], 1

</llo_original>
